<compile_context>
chip_gen: v5e
topology: v5e:2x2
jax: 0.10.0
libtpu: 0.0.40
codegen_flags: <defaults>
</compile_context>

<pallas_src>
import functools
import math

import jax
import jax.numpy as jnp
from jax import lax
from jax.experimental import pallas as pl
from jax.experimental.pallas import tpu as pltpu

_LANE = 128                     # lane slab / padded feature width granularity
_MAX_TILE_DST = 256             # dst-node tile (rows of adj / output)
_MAX_TILE_SRC = 1024            # src-node tile (reduction axis)
_VMEM_LIMIT = 32 * 1024 * 1024  # explicit scoped-VMEM budget (safe on v7x's 64 MiB)


def _round_up(x, m):
    return ((x + m - 1) // m) * m


def _pad2d(x, rows, cols, dtype):
    out = jnp.zeros((rows, cols), dtype)
    return out.at[: x.shape[0], : x.shape[1]].set(x.astype(dtype))


# ---------------------------------------------------------------------------
# Kernels
# ---------------------------------------------------------------------------
def _proj_kernel(h_ref, qwT_ref, qb_ref, out_ref):
    # n_src = relu(h @ Q^T + q_b); q_b's spare lane == 1.0 (zero weight column)
    # rides along so the aggregation kernel gets ws from the MXU for free.
    z = jnp.dot(h_ref[...], qwT_ref[...], preferred_element_type=jnp.float32)
    out_ref[...] = jnp.maximum(z + qb_ref[...], 0.0).astype(out_ref.dtype)


def _agg_kernel(hidden, adj_ref, nsrc_ref, hdst_ref, wwnT_ref, wwhT_ref, wb_ref,
                out_ref, acc_ref):
    k = pl.program_id(1)

    @pl.when(k == 0)
    def _():
        acc_ref[...] = jnp.zeros_like(acc_ref)

    # update_all(u_mul_e + sum)  ==  A @ n_src ; the ones-lane accumulates ws.
    acc_ref[...] += jnp.dot(adj_ref[...], nsrc_ref[...],
                            preferred_element_type=jnp.float32)

    @pl.when(k == pl.num_programs(1) - 1)
    def _():
        acc = acc_ref[...]                                        # (tile_dst, HP) f32
        # extract ws from the ones-lane (lane == hidden) via masked lane-reduce
        col = lax.broadcasted_iota(jnp.int32, acc.shape, 1)
        ws = jnp.sum(jnp.where(col == hidden, acc, 0.0), axis=-1, keepdims=True)
        ws = jnp.maximum(ws, 1.0)                                 # clamp(min=1)
        inv_ws = pl.reciprocal(ws, approx=True)                   # EUP slot, ~free
        n_scaled = (acc * inv_ws).astype(wwnT_ref.dtype)          # bf16 for MXU
        # W(cat([n/ws, h_dst], 1)) split into two GEMMs; f32 epilogue (v5e-safe).
        z = (jnp.dot(n_scaled, wwnT_ref[...], preferred_element_type=jnp.float32)
             + jnp.dot(hdst_ref[...], wwhT_ref[...], preferred_element_type=jnp.float32)
             + wb_ref[...])
        out_ref[...] = jnp.maximum(z, 0.0).astype(out_ref.dtype)


# ---------------------------------------------------------------------------
# Per-layer wrapper
# ---------------------------------------------------------------------------
def prepare_layer(q_w, q_b, w_w, w_b):
    """Pad / pre-transpose / pre-split layer weights once (outside forward)."""
    h = q_w.shape[0]                       # hidden == input == output dims
    hp = _round_up(h + 1, _LANE)           # +1 spare lane carries the ws ones-column
    qwT = _pad2d(q_w.T, hp, hp, jnp.bfloat16)
    qb = jnp.zeros((1, hp), jnp.float32).at[0, :h].set(q_b).at[0, h].set(1.0)
    wwnT = _pad2d(w_w[:, :h].T, hp, hp, jnp.bfloat16)   # multiplies n/ws
    wwhT = _pad2d(w_w[:, h:].T, hp, hp, jnp.bfloat16)   # multiplies h_dst
    wb = jnp.zeros((1, hp), jnp.float32).at[0, :h].set(w_b)
    return dict(hidden=h, hp=hp, qwT=qwT, qb=qb, wwnT=wwnT, wwhT=wwhT, wb=wb)


def weighted_sage_conv(h, adj, p, out_dtype=jnp.float32):
    """One WeightedSAGEConv layer.  h:(N_src, D), adj:(N_dst, N_src) f32."""
    hidden, hp = p["hidden"], p["hp"]
    n_dst, n_src = adj.shape

    tile_src = min(_MAX_TILE_SRC, _round_up(n_src, _LANE))
    tile_dst = min(_MAX_TILE_DST, _round_up(n_dst, 16))
    n_src_p = _round_up(n_src, tile_src)
    n_dst_p = _round_up(n_dst, tile_dst)
    src_blocks = n_src_p // tile_src
    dst_blocks = n_dst_p // tile_dst

    # bf16 MXU inputs (accumulation stays f32 inside the kernels); zero padding
    # rows/cols keep semantics exact (padded adj columns are 0).
    h_src = _pad2d(h, n_src_p, hp, jnp.bfloat16)
    h_dst = _pad2d(h[:n_dst], n_dst_p, hp, jnp.bfloat16)
    adj_p = _pad2d(adj, n_dst_p, n_src_p, jnp.bfloat16)

    # Phase 1: Q projection, computed once per layer (not per dst tile).
    nsrc = pl.pallas_call(
        _proj_kernel,
        out_shape=jax.ShapeDtypeStruct((n_src_p, hp), jnp.bfloat16),
        grid_spec=pltpu.PrefetchScalarGridSpec(
            num_scalar_prefetch=0,
            grid=(src_blocks,),
            in_specs=[pl.BlockSpec((tile_src, hp), lambda i: (i, 0)),
                      pl.BlockSpec((hp, hp), lambda i: (0, 0)),
                      pl.BlockSpec((1, hp), lambda i: (0, 0))],
            out_specs=pl.BlockSpec((tile_src, hp), lambda i: (i, 0))),
        compiler_params=pltpu.CompilerParams(
            dimension_semantics=("parallel",),
            vmem_limit_bytes=_VMEM_LIMIT),
    )(h_src, p["qwT"], p["qb"])

    # Phase 2: tiled aggregation (dst tiles parallel, src tiles = reduction axis).
    out = pl.pallas_call(
        functools.partial(_agg_kernel, hidden),
        out_shape=jax.ShapeDtypeStruct((n_dst_p, hp), out_dtype),
        grid_spec=pltpu.PrefetchScalarGridSpec(
            num_scalar_prefetch=0,
            grid=(dst_blocks, src_blocks),
            in_specs=[pl.BlockSpec((tile_dst, tile_src), lambda i, k: (i, k)),
                      pl.BlockSpec((tile_src, hp), lambda i, k: (k, 0)),
                      pl.BlockSpec((tile_dst, hp), lambda i, k: (i, 0)),
                      pl.BlockSpec((hp, hp), lambda i, k: (0, 0)),
                      pl.BlockSpec((hp, hp), lambda i, k: (0, 0)),
                      pl.BlockSpec((1, hp), lambda i, k: (0, 0))],
            out_specs=pl.BlockSpec((tile_dst, hp), lambda i, k: (i, 0)),
            scratch_shapes=[pltpu.VMEM((tile_dst, hp), jnp.float32)]),
        compiler_params=pltpu.CompilerParams(
            dimension_semantics=("parallel", "arbitrary"),
            vmem_limit_bytes=_VMEM_LIMIT),
    )(adj_p, nsrc, h_dst, p["wwnT"], p["wwhT"], p["wb"])

    return out[:n_dst, :hidden]


def sagenet_forward(prepped_params, adjs, h):
    """SAGENet.forward: blocks given as dense adjacency matrices."""
    n_layers = len(prepped_params)
    for li, (p, adj) in enumerate(zip(prepped_params, adjs)):
        # intermediate layers stay bf16 (they get cast back to bf16 for the next
        # layer's MXU anyway); only the final layer materializes f32.
        out_dtype = jnp.float32 if li == n_layers - 1 else jnp.bfloat16
        h = weighted_sage_conv(h, adj, p, out_dtype=out_dtype)
    return h


# ---------------------------------------------------------------------------
# Parameter init (matches PyTorch reset_parameters)
# ---------------------------------------------------------------------------
def xavier_uniform(key, shape, gain):
    fan_out, fan_in = shape
    bound = gain * math.sqrt(6.0 / (fan_in + fan_out))
    return jax.random.uniform(key, shape, jnp.float32, -bound, bound)


def init_sagenet(key, hidden_dims, n_layers):
    gain = math.sqrt(2.0)  # calculate_gain('relu')
    params = []
    for _ in range(n_layers):
        key, kq, kw = jax.random.split(key, 3)
        q_w = xavier_uniform(kq, (hidden_dims, hidden_dims), gain)
        q_b = jnp.zeros((hidden_dims,), jnp.float32)
        w_w = xavier_uniform(kw, (hidden_dims, 2 * hidden_dims), gain)
        w_b = jnp.zeros((hidden_dims,), jnp.float32)
        params.append((q_w, q_b, w_w, w_b))
    return params


if __name__ == "__main__":
    hidden_dims = 32
    n_layers = 2
    n_src = [16, 8]   # src nodes of block 0, block 1
    n_dst = [8, 4]    # dst nodes of block 0, block 1 (dst_i == src_{i+1})

    key = jax.random.PRNGKey(0)
    key, kh = jax.random.split(key)
    h0 = jax.random.normal(kh, (n_src[0], hidden_dims), jnp.float32)

    adjs = []
    for li in range(n_layers):
        key, km, kw = jax.random.split(key, 3)
        mask = (jax.random.uniform(km, (n_dst[li], n_src[li])) < 0.6).astype(jnp.float32)
        w = jax.random.uniform(kw, (n_dst[li], n_src[li]), jnp.float32, 0.1, 1.0)
        adjs.append(mask * w)

    key, kp = jax.random.split(key)
    params = init_sagenet(kp, hidden_dims, n_layers)
    prepped = [prepare_layer(*p) for p in params]   # pad/transpose weights once

    out = sagenet_forward(prepped, adjs, h0)
    out = jax.block_until_ready(out)
    assert out.shape == (n_dst[-1], hidden_dims) and out.dtype == jnp.float32
    print("KERNEL_OK")
</pallas_src>

<mosaic_0001>
module attributes {stable_mosaic.version = 11 : i64} {
  func.func @_proj_kernel(%arg0: i32, %arg1: memref<128x128xbf16, #tpu.memory_space<vmem>>, %arg2: memref<128x128xbf16, #tpu.memory_space<vmem>>, %arg3: memref<1x128xf32, #tpu.memory_space<vmem>>, %arg4: memref<128x128xbf16, #tpu.memory_space<vmem>>) attributes {dimension_semantics = [#tpu.dimension_semantics<parallel>], iteration_bounds = array<i64: 1>, scalar_prefetch = 0 : i64, scratch_operands = 0 : i64, tpu.core_type = #tpu.core_type<tc>, window_params = [{transform_indices = @transform_0, window_bounds = array<i64: 128, 128>}, {pipeline_mode = #tpu.pipeline_mode<synchronous>, transform_indices = @transform_1, window_bounds = array<i64: 128, 128>}, {pipeline_mode = #tpu.pipeline_mode<synchronous>, transform_indices = @transform_2, window_bounds = array<i64: 1, 128>}, {transform_indices = @transform_3, window_bounds = array<i64: 128, 128>}]} {
    %c0 = arith.constant 0 : index
    %c0_0 = arith.constant 0 : index
    %0 = vector.load %arg1[%c0, %c0_0] : memref<128x128xbf16, #tpu.memory_space<vmem>>, vector<128x128xbf16>
    %c0_1 = arith.constant 0 : index
    %c0_2 = arith.constant 0 : index
    %1 = vector.load %arg2[%c0_1, %c0_2] : memref<128x128xbf16, #tpu.memory_space<vmem>>, vector<128x128xbf16>
    %cst = arith.constant dense<0.000000e+00> : vector<128x128xf32>
    %2 = tpu.matmul %0, %1, %cst {dimension_numbers = #tpu.dot_dimension_numbers<[1], [0], [0], [1], [0, 0, 1, 1], [], []>} : vector<128x128xbf16>, vector<128x128xbf16>, vector<128x128xf32> -> vector<128x128xf32>
    %c0_3 = arith.constant 0 : index
    %c0_4 = arith.constant 0 : index
    %3 = vector.load %arg3[%c0_3, %c0_4] : memref<1x128xf32, #tpu.memory_space<vmem>>, vector<1x128xf32>
    %4 = vector.broadcast %3 : vector<1x128xf32> to vector<128x128xf32>
    %5 = arith.addf %2, %4 : vector<128x128xf32>
    %cst_5 = arith.constant 0.000000e+00 : f32
    %6 = vector.broadcast %cst_5 : f32 to vector<128x128xf32>
    %7 = arith.maximumf %5, %6 : vector<128x128xf32>
    %8 = arith.truncf %7 : vector<128x128xf32> to vector<128x128xbf16>
    %c0_6 = arith.constant 0 : index
    %c0_7 = arith.constant 0 : index
    %9 = vector.load %arg4[%c0_6, %c0_7] : memref<128x128xbf16, #tpu.memory_space<vmem>>, vector<128x128xbf16>
    tpu.vector_store %arg4[%c0_6, %c0_7], %8 {strides = array<i32>} : memref<128x128xbf16, #tpu.memory_space<vmem>>, vector<128x128xbf16>,
    return
  }
  func.func @transform_0(%arg0: i32) -> (i32, i32) {
    %c0_i32 = arith.constant 0 : i32
    %c0_i32_0 = arith.constant 0 : i32
    return %arg0, %c0_i32 : i32, i32
  }
  func.func @transform_1(%arg0: i32) -> (i32, i32) {
    %c0_i32 = arith.constant 0 : i32
    %c0_i32_0 = arith.constant 0 : i32
    %c0_i32_1 = arith.constant 0 : i32
    return %c0_i32, %c0_i32_0 : i32, i32
  }
  func.func @transform_2(%arg0: i32) -> (i32, i32) {
    %c0_i32 = arith.constant 0 : i32
    %c0_i32_0 = arith.constant 0 : i32
    %c0_i32_1 = arith.constant 0 : i32
    return %c0_i32, %c0_i32_0 : i32, i32
  }
  func.func @transform_3(%arg0: i32) -> (i32, i32) {
    %c0_i32 = arith.constant 0 : i32
    %c0_i32_0 = arith.constant 0 : i32
    return %arg0, %c0_i32 : i32, i32
  }
}

</mosaic_0001>

<llo_original>
// kernel: tpu_custom_call.1
$region0: #{tpu_custom_call.1}
  #allocation0 [shape = 'u32[]', space=smem, size = 0x4, offset = 0x4, fixed_abs, tag = 'smem constant byte address 0x4 - core index']
  #allocation1 [shape = 'u32[72,128]{1,0:T(1,128)}', space=vmem, size = 0x9000, scoped, tag = 'internal scratch']
  %s0 = inlined_call_operand.hbm [shape: bf16[128,128], index: 0, kind: input, shape index: {}]
  %s1 = inlined_call_operand.hbm [shape: bf16[128,128], index: 1, kind: input, shape index: {}]
  %s2 = inlined_call_operand.vmem [shape: f32[1,128], index: 2, kind: input, shape index: {}]
  %s3 = inlined_call_operand.hbm [shape: bf16[128,128], index: 3, kind: output, shape index: {}]
  %s4 = sld [smem:[#allocation0]]
  $region30: #{tpu_custom_call.1} parent=0
    _
  %s6 = ssub.s32 1, %s4
  %s7 = scalar_select 0, %s6, %s4
  $region1: #{tpu_custom_call.1} parent=0
    #allocation2 [shape = 'u8[32768]{0}', space=vmem, size = 0x8000, scoped, tag = 'input window, operand 0, single buffered']
    #allocation3 [shape = 's32[1]{0}', space=sflag, size = 0x4, scoped, tag = 'scoped memory for tpu_custom_call.1']
    #allocation4 [shape = 's32[1]{0}', space=sflag, size = 0x4, scoped, tag = 'scoped memory for tpu_custom_call.1']
    #allocation5 [shape = 'u8[32768]{0}', space=vmem, size = 0x8000, scoped, tag = 'input window, operand 1, single buffered']
    #allocation6 [shape = 's32[1]{0}', space=sflag, size = 0x4, scoped, tag = 'scoped memory for tpu_custom_call.1']
    #allocation7 [shape = 'u8[32768]{0}', space=vmem, size = 0x8000, scoped, tag = 'output window, operand 0, single buffered']
    %8 = vsyncpa [#allocation3], 0
    %9 = vsyncpa [#allocation6], 0
    %10 = vsyncpa [#allocation4], 0
    // Predicated region
    $region2: #{tpu_custom_call.1} parent=1 // pred_check
      _
    $region3: #{tpu_custom_call.1} parent=1 // pred_check_branch
      %12 = sbr.rel (0) target = $region5
    $region4: #{tpu_custom_call.1} parent=1 // pred_region
      %14 = vsyncadd [#allocation3], 0
      %s15 = sshll.u32 %s0, 4
      %s16 = int_to_ptr.hbm [resolvable:$true] %s15
      %s17 = sshll.u32 [#allocation2], 4
      %s18 = int_to_ptr.vmem [resolvable:$true] %s17
      %23 = dma.hbm_to_vmem [thread:$0]  %s16, 1024, %s18, [#allocation3], 64, 64, 4
    $region5: #{tpu_custom_call.1} parent=1 // pred_fallthru
      _
    // Predicated region
    $region6: #{tpu_custom_call.1} parent=1 // pred_check
      _
    $region7: #{tpu_custom_call.1} parent=1 // pred_check_branch
      %25 = sbr.rel (0) target = $region9
    $region8: #{tpu_custom_call.1} parent=1 // pred_region
      %27 = vsyncadd [#allocation6], 0
      %s28 = sshll.u32 %s1, 4
      %s29 = int_to_ptr.hbm [resolvable:$true] %s28
      %s30 = sshll.u32 [#allocation5], 4
      %s31 = int_to_ptr.vmem [resolvable:$true] %s30
      %36 = dma.hbm_to_vmem [thread:$0]  %s29, 1024, %s31, [#allocation6], 64, 64, 4
    $region9: #{tpu_custom_call.1} parent=1 // pred_fallthru
      _
    // Predicated region
    $region10: #{tpu_custom_call.1} parent=1 // pred_check
      _
    $region11: #{tpu_custom_call.1} parent=1 // pred_check_branch
      %38 = sbr.rel (0) target = $region13
    $region12: #{tpu_custom_call.1} parent=1 // pred_region
      _
    $region13: #{tpu_custom_call.1} parent=1 // pred_fallthru
      _
    // Predicated region
    $region14: #{tpu_custom_call.1} parent=1 // pred_check
      _
    $region15: #{tpu_custom_call.1} parent=1 // pred_check_branch
      %40 = sbr.rel (0) target = $region17
    $region16: #{tpu_custom_call.1} parent=1 // pred_region
      %42 = dma.done [#allocation3], 1024
    $region17: #{tpu_custom_call.1} parent=1 // pred_fallthru
      _
    // Predicated region
    $region18: #{tpu_custom_call.1} parent=1 // pred_check
      _
    $region19: #{tpu_custom_call.1} parent=1 // pred_check_branch
      %44 = sbr.rel (0) target = $region21
    $region20: #{tpu_custom_call.1} parent=1 // pred_region
      %46 = dma.done [#allocation6], 1024
    $region21: #{tpu_custom_call.1} parent=1 // pred_fallthru
      _
    %v47 = vld [vmem:[#allocation2] sm:$0xf]
    %v48 = vld [vmem:[#allocation2 + $0x4] sm:$0xf]
    %v49 = vld [vmem:[#allocation2 + $0x8] sm:$0xf]
    %v50 = vld [vmem:[#allocation2 + $0xc] sm:$0xf]
    %v51 = vld [vmem:[#allocation2 + $0x10] sm:$0xf]
    %v52 = vld [vmem:[#allocation2 + $0x14] sm:$0xf]
    %v53 = vld [vmem:[#allocation2 + $0x18] sm:$0xf]
    %v54 = vld [vmem:[#allocation2 + $0x1c] sm:$0xf]
    %v55 = vld [vmem:[#allocation2 + $0x20] sm:$0xf]
    %v56 = vld [vmem:[#allocation2 + $0x24] sm:$0xf]
    %v57 = vld [vmem:[#allocation2 + $0x28] sm:$0xf]
    %v58 = vld [vmem:[#allocation2 + $0x2c] sm:$0xf]
    %v59 = vld [vmem:[#allocation2 + $0x30] sm:$0xf]
    %v60 = vld [vmem:[#allocation2 + $0x34] sm:$0xf]
    %v61 = vld [vmem:[#allocation2 + $0x38] sm:$0xf]
    %v62 = vld [vmem:[#allocation2 + $0x3c] sm:$0xf]
    %v63 = vld [vmem:[#allocation5] sm:$0xf]
    %v64 = vld [vmem:[#allocation5 + $0x4] sm:$0xf]
    %v65 = vld [vmem:[#allocation5 + $0x8] sm:$0xf]
    %v66 = vld [vmem:[#allocation5 + $0xc] sm:$0xf]
    %v67 = vld [vmem:[#allocation5 + $0x10] sm:$0xf]
    %v68 = vld [vmem:[#allocation5 + $0x14] sm:$0xf]
    %v69 = vld [vmem:[#allocation5 + $0x18] sm:$0xf]
    %v70 = vld [vmem:[#allocation5 + $0x1c] sm:$0xf]
    %v71 = vld [vmem:[#allocation5 + $0x20] sm:$0xf]
    %v72 = vld [vmem:[#allocation5 + $0x24] sm:$0xf]
    %v73 = vld [vmem:[#allocation5 + $0x28] sm:$0xf]
    %v74 = vld [vmem:[#allocation5 + $0x2c] sm:$0xf]
    %v75 = vld [vmem:[#allocation5 + $0x30] sm:$0xf]
    %v76 = vld [vmem:[#allocation5 + $0x34] sm:$0xf]
    %v77 = vld [vmem:[#allocation5 + $0x38] sm:$0xf]
    %v78 = vld [vmem:[#allocation5 + $0x3c] sm:$0xf]
    %v79 = vld [vmem:[%s2] sm:$0x1]
    %v81 = vperm.slane %v79, 0
    %v99 = vunpack.c.l.b16 %v47
    %v100 = vunpack.c.l.b16 %v48
    %v101 = vunpack.c.l.b16 %v49
    %v102 = vunpack.c.l.b16 %v50
    %v103 = vunpack.c.l.b16 %v51
    %v104 = vunpack.c.l.b16 %v52
    %v105 = vunpack.c.l.b16 %v53
    %v106 = vunpack.c.l.b16 %v54
    %v107 = vunpack.c.l.b16 %v55
    %v108 = vunpack.c.l.b16 %v56
    %v109 = vunpack.c.l.b16 %v57
    %v110 = vunpack.c.l.b16 %v58
    %v111 = vunpack.c.l.b16 %v59
    %v112 = vunpack.c.l.b16 %v60
    %v113 = vunpack.c.l.b16 %v61
    %v114 = vunpack.c.l.b16 %v62
    %v115 = vpack.c.b16 %v100, %v99
    %v116 = vpack.c.b16 %v102, %v101
    %v117 = vpack.c.b16 %v104, %v103
    %v118 = vpack.c.b16 %v106, %v105
    %v119 = vpack.c.b16 %v108, %v107
    %v120 = vpack.c.b16 %v110, %v109
    %v121 = vpack.c.b16 %v112, %v111
    %v122 = vpack.c.b16 %v114, %v113
    %v147 = vunpack.c.l.b16 %v63
    %v148 = vunpack.c.l.b16 %v64
    %v149 = vunpack.c.l.b16 %v65
    %v150 = vunpack.c.l.b16 %v66
    %v151 = vunpack.c.l.b16 %v67
    %v152 = vunpack.c.l.b16 %v68
    %v153 = vunpack.c.l.b16 %v69
    %v154 = vunpack.c.l.b16 %v70
    %v155 = vunpack.c.l.b16 %v71
    %v156 = vunpack.c.l.b16 %v72
    %v157 = vunpack.c.l.b16 %v73
    %v158 = vunpack.c.l.b16 %v74
    %v159 = vunpack.c.l.b16 %v75
    %v160 = vunpack.c.l.b16 %v76
    %v161 = vunpack.c.l.b16 %v77
    %v162 = vunpack.c.l.b16 %v78
    %v163 = vpack.c.b16 %v148, %v147
    %v164 = vpack.c.b16 %v150, %v149
    %v165 = vpack.c.b16 %v152, %v151
    %v166 = vpack.c.b16 %v154, %v153
    %v167 = vpack.c.b16 %v156, %v155
    %v168 = vpack.c.b16 %v158, %v157
    %v169 = vpack.c.b16 %v160, %v159
    %v170 = vpack.c.b16 %v162, %v161
    %179 = vmatpush.bf16.msra.mxu0 %v170
    %180 = vmatpush.bf16.msra.mxu0 %v169
    %181 = vmatpush.bf16.msra.mxu0 %v168
    %182 = vmatpush.bf16.msra.mxu0 %v167
    %183 = vmatpush.bf16.msra.mxu0 %v166
    %184 = vmatpush.bf16.msra.mxu0 %v165
    %185 = vmatpush.bf16.msra.mxu0 %v164
    %186 = vmatpush.bf16.msra.mxu0 %v163
    %187 = vmatmul.bf16.gmra.mxu0 %v115
    %v188 = vpop.f32.mrf.mxu0
    %v189 = vadd.f32 %v81, %v188
    %v190 = vpop.f32.mrf.mxu0
    %v191 = vadd.f32 %v81, %v190
    %192 = vmatmul.bf16.gmra.mxu0 %v116
    %v193 = vpop.f32.mrf.mxu0
    %v194 = vadd.f32 %v81, %v193
    %v195 = vpop.f32.mrf.mxu0
    %v196 = vadd.f32 %v81, %v195
    %197 = vmatmul.bf16.gmra.mxu0 %v117
    %v198 = vpop.f32.mrf.mxu0
    %v199 = vadd.f32 %v81, %v198
    %v200 = vpop.f32.mrf.mxu0
    %v201 = vadd.f32 %v81, %v200
    %202 = vmatmul.bf16.gmra.mxu0 %v118
    %v203 = vpop.f32.mrf.mxu0
    %v204 = vadd.f32 %v81, %v203
    %v205 = vpop.f32.mrf.mxu0
    %v206 = vadd.f32 %v81, %v205
    %207 = vmatmul.bf16.gmra.mxu0 %v119
    %v208 = vpop.f32.mrf.mxu0
    %v209 = vadd.f32 %v81, %v208
    %v210 = vpop.f32.mrf.mxu0
    %v211 = vadd.f32 %v81, %v210
    %212 = vmatmul.bf16.gmra.mxu0 %v120
    %v213 = vpop.f32.mrf.mxu0
    %v214 = vadd.f32 %v81, %v213
    %v215 = vpop.f32.mrf.mxu0
    %v216 = vadd.f32 %v81, %v215
    %217 = vmatmul.bf16.gmra.mxu0 %v121
    %v218 = vpop.f32.mrf.mxu0
    %v219 = vadd.f32 %v81, %v218
    %v220 = vpop.f32.mrf.mxu0
    %v221 = vadd.f32 %v81, %v220
    %222 = vmatmul.bf16.gmra.mxu0 %v122
    %v223 = vpop.f32.mrf.mxu0
    %v224 = vadd.f32 %v81, %v223
    %v225 = vpop.f32.mrf.mxu0
    %v226 = vadd.f32 %v81, %v225
    %227 = vdwg.mxu0
    %v228 = vmax.f32 %v189, 0.0
    %v229 = vmax.f32 %v191, 0.0
    %v230 = vmax.f32 %v194, 0.0
    %v231 = vmax.f32 %v196, 0.0
    %v232 = vmax.f32 %v199, 0.0
    %v233 = vmax.f32 %v201, 0.0
    %v234 = vmax.f32 %v204, 0.0
    %v235 = vmax.f32 %v206, 0.0
    %v236 = vmax.f32 %v209, 0.0
    %v237 = vmax.f32 %v211, 0.0
    %v238 = vmax.f32 %v214, 0.0
    %v239 = vmax.f32 %v216, 0.0
    %v240 = vmax.f32 %v219, 0.0
    %v241 = vmax.f32 %v221, 0.0
    %v242 = vmax.f32 %v224, 0.0
    %v243 = vmax.f32 %v226, 0.0
    %v244 = vpack.c.bf16 %v228, %v228
    %v245 = vpack.c.bf16 %v229, %v229
    %v246 = vpack.c.bf16 %v230, %v230
    %v247 = vpack.c.bf16 %v231, %v231
    %v248 = vpack.c.bf16 %v232, %v232
    %v249 = vpack.c.bf16 %v233, %v233
    %v250 = vpack.c.bf16 %v234, %v234
    %v251 = vpack.c.bf16 %v235, %v235
    %v252 = vpack.c.bf16 %v236, %v236
    %v253 = vpack.c.bf16 %v237, %v237
    %v254 = vpack.c.bf16 %v238, %v238
    %v255 = vpack.c.bf16 %v239, %v239
    %v256 = vpack.c.bf16 %v240, %v240
    %v257 = vpack.c.bf16 %v241, %v241
    %v258 = vpack.c.bf16 %v242, %v242
    %v259 = vpack.c.bf16 %v243, %v243
    %260 = vst [vmem:[#allocation7] sm:$0xf] %v244
    %261 = vst [vmem:[#allocation7 + $0x4] sm:$0xf] %v245
    %262 = vst [vmem:[#allocation7 + $0x8] sm:$0xf] %v246
    %263 = vst [vmem:[#allocation7 + $0xc] sm:$0xf] %v247
    %264 = vst [vmem:[#allocation7 + $0x10] sm:$0xf] %v248
    %265 = vst [vmem:[#allocation7 + $0x14] sm:$0xf] %v249
    %266 = vst [vmem:[#allocation7 + $0x18] sm:$0xf] %v250
    %267 = vst [vmem:[#allocation7 + $0x1c] sm:$0xf] %v251
    %268 = vst [vmem:[#allocation7 + $0x20] sm:$0xf] %v252
    %269 = vst [vmem:[#allocation7 + $0x24] sm:$0xf] %v253
    %270 = vst [vmem:[#allocation7 + $0x28] sm:$0xf] %v254
    %271 = vst [vmem:[#allocation7 + $0x2c] sm:$0xf] %v255
    %272 = vst [vmem:[#allocation7 + $0x30] sm:$0xf] %v256
    %273 = vst [vmem:[#allocation7 + $0x34] sm:$0xf] %v257
    %274 = vst [vmem:[#allocation7 + $0x38] sm:$0xf] %v258
    %275 = vst [vmem:[#allocation7 + $0x3c] sm:$0xf] %v259
    // Predicated region
    $region22: #{tpu_custom_call.1} parent=1 // pred_check
      _
    $region23: #{tpu_custom_call.1} parent=1 // pred_check_branch
      %277 = sbr.rel (0) target = $region25
    $region24: #{tpu_custom_call.1} parent=1 // pred_region
      %279 = vsyncadd [#allocation4], 0
      %s280 = sshll.u32 [#allocation7], 4
      %s281 = int_to_ptr.vmem [resolvable:$true] %s280
      %s282 = sshll.u32 %s3, 4
      %s283 = int_to_ptr.hbm [resolvable:$true] %s282
      %288 = dma.vmem_to_hbm [thread:$0]  %s281, 1024, %s283, [#allocation4], 64, 64, 4
    $region25: #{tpu_custom_call.1} parent=1 // pred_fallthru
      _
    // Predicated region
    $region26: #{tpu_custom_call.1} parent=1 // pred_check
      _
    $region27: #{tpu_custom_call.1} parent=1 // pred_check_branch
      %290 = sbr.rel (0) target = $region29
    $region28: #{tpu_custom_call.1} parent=1 // pred_region
      %292 = dma.done [#allocation4], 1024
    $region29: #{tpu_custom_call.1} parent=1 // pred_fallthru
      _
    %293 = vsyncpa [#allocation3], 1
    %294 = vsyncpa [#allocation6], 1
    %295 = vsyncpa [#allocation4], 1

</llo_original>
